<compile_context>
chip_gen: v5e
topology: v5e:2x2
jax: 0.10.0
libtpu: 0.0.40
codegen_flags: <defaults>
</compile_context>

<pallas_src>
import functools

import jax
import jax.numpy as jnp
from jax.experimental import pallas as pl
from jax.experimental.pallas import tpu as pltpu

LANE = 128  # TPU lane width; also the padded output / packed-slab width.


def _round_up(n, m):
    return (n + m - 1) // m * m


def iris_sort_kernel(x_ref, p_ref, out_ref, *, d_in, hidden,
                     b1_row, w2_row, b2_row):
    # x_ref: (B, D_in)            p_ref: (R, 128) packed params
    # out_ref: (B, 128) lane-dense (cols >= D_out are zero-padded garbage-free)
    x = x_ref[...]

    # Static slices into the packed slab (zero-cost views of the VMEM block).
    w1 = p_ref[0:d_in, 0:hidden]                 # (D_in, H)
    b1 = p_ref[b1_row:b1_row + 1, 0:hidden]      # (1, H)
    w2 = p_ref[w2_row:w2_row + hidden, :]        # (H, 128), zero-padded lanes
    b2 = p_ref[b2_row:b2_row + 1, :]             # (1, 128), zero-padded lanes

    # fc1: x @ W1 + b1  (MXU, f32 accumulate)
    h = jnp.dot(x, w1, preferred_element_type=jnp.float32) + b1
    # sigmoid activation (EUP transcendental, kept in f32 for v5e)
    h = jax.nn.sigmoid(h)
    # fc2: h @ W2 + b2 -> lane-dense (B, 128) store
    o = jnp.dot(h, w2, preferred_element_type=jnp.float32) + b2

    out_ref[...] = o.astype(out_ref.dtype)


def pack_params(w1, b1, w2, b2):
    """Pack w1 (D_in,H), b1 (H,), w2 (H,D_out), b2 (D_out,) into one
    (rows, 128) f32 slab with 8-row-aligned segments, zero-padded."""
    d_in, hidden = w1.shape
    hidden2, d_out = w2.shape
    assert hidden2 == hidden
    assert hidden <= LANE and d_out <= LANE, "packing assumes features <= 128"

    b1_row = _round_up(d_in, 8)                  # w1 occupies rows [0, b1_row)
    w2_row = b1_row + 8                          # b1 occupies one row segment
    b2_row = w2_row + _round_up(hidden, 8)       # w2 occupies hidden rows
    n_rows = _round_up(b2_row + 8, 8)

    slab = jnp.zeros((n_rows, LANE), jnp.float32)
    slab = slab.at[0:d_in, 0:hidden].set(w1.astype(jnp.float32))
    slab = slab.at[b1_row, 0:hidden].set(b1.astype(jnp.float32))
    slab = slab.at[w2_row:w2_row + hidden, 0:d_out].set(w2.astype(jnp.float32))
    slab = slab.at[b2_row, 0:d_out].set(b2.astype(jnp.float32))

    layout = dict(d_in=d_in, hidden=hidden, d_out=d_out,
                  b1_row=b1_row, w2_row=w2_row, b2_row=b2_row)
    return slab, layout


def iris_sort_forward(x, w1, b1, w2, b2):
    """x: (B, D_in); w1: (D_in, H); b1: (H,); w2: (H, D_out); b2: (D_out,)."""
    slab, lay = pack_params(w1, b1, w2, b2)
    B = x.shape[0]
    d_out = lay["d_out"]

    kernel = functools.partial(
        iris_sort_kernel,
        d_in=lay["d_in"], hidden=lay["hidden"],
        b1_row=lay["b1_row"], w2_row=lay["w2_row"], b2_row=lay["b2_row"])

    vmem_spec = pl.BlockSpec(memory_space=pltpu.MemorySpace.VMEM)

    out_padded = pl.pallas_call(
        kernel,
        out_shape=jax.ShapeDtypeStruct((B, LANE), jnp.float32),
        in_specs=[vmem_spec, vmem_spec],      # x, packed params -> 2 DMAs total
        out_specs=vmem_spec,                  # lane-dense (B, 128) writeback
    )(x.astype(jnp.float32), slab)

    return out_padded[:, :d_out]


def make_params(key, input_size, hidden_size, output_size):
    """Matches the PyTorch module's __init__: weights ~ N(0, 0.01), biases = 1.
    PyTorch stores Linear weight as (out, in); build it that way then transpose
    to (in, out) for the x @ W kernel layout."""
    k1, k2 = jax.random.split(key)
    fc1_w = 0.01 * jax.random.normal(k1, (hidden_size, input_size), jnp.float32)
    fc1_b = jnp.ones((hidden_size,), jnp.float32)
    fc2_w = 0.01 * jax.random.normal(k2, (output_size, hidden_size), jnp.float32)
    fc2_b = jnp.ones((output_size,), jnp.float32)
    return fc1_w.T, fc1_b, fc2_w.T, fc2_b


if __name__ == "__main__":
    # Iris-like sizes: 4 input features, 32 hidden units, 3 classes, batch 8.
    input_size, hidden_size, output_size = 4, 32, 3
    batch = 8

    key = jax.random.PRNGKey(0)
    kx, kp = jax.random.split(key)

    x = jax.random.normal(kx, (batch, input_size), jnp.float32)
    w1, b1, w2, b2 = make_params(kp, input_size, hidden_size, output_size)

    out = iris_sort_forward(x, w1, b1, w2, b2)
    out = jax.block_until_ready(out)

    # Pure-JAX reference check of the forward semantics.
    ref = jax.nn.sigmoid(x @ w1 + b1) @ w2 + b2
    assert out.shape == (batch, output_size)
    assert jnp.allclose(out, ref, atol=1e-5, rtol=1e-5)

    print("KERNEL_OK")
</pallas_src>

<mosaic_0001>
module attributes {stable_mosaic.version = 11 : i64} {
  func.func @iris_sort_kernel(%arg0: memref<8x4xf32, #tpu.memory_space<vmem>>, %arg1: memref<56x128xf32, #tpu.memory_space<vmem>>, %arg2: memref<8x128xf32, #tpu.memory_space<vmem>>) attributes {dimension_semantics = [], scalar_prefetch = 0 : i64, scratch_operands = 0 : i64, tpu.core_type = #tpu.core_type<tc>} {
    %c0 = arith.constant 0 : index
    %c0_0 = arith.constant 0 : index
    %0 = vector.load %arg0[%c0, %c0_0] : memref<8x4xf32, #tpu.memory_space<vmem>>, vector<8x4xf32>
    %c0_1 = arith.constant 0 : index
    %c0_2 = arith.constant 0 : index
    %1 = vector.load %arg1[%c0_1, %c0_2] : memref<56x128xf32, #tpu.memory_space<vmem>>, vector<4x32xf32>
    %c8 = arith.constant 8 : index
    %c0_3 = arith.constant 0 : index
    %2 = vector.load %arg1[%c8, %c0_3] : memref<56x128xf32, #tpu.memory_space<vmem>>, vector<1x32xf32>
    %c16 = arith.constant 16 : index
    %c0_4 = arith.constant 0 : index
    %3 = vector.load %arg1[%c16, %c0_4] : memref<56x128xf32, #tpu.memory_space<vmem>>, vector<32x128xf32>
    %c48 = arith.constant 48 : index
    %c0_5 = arith.constant 0 : index
    %4 = vector.load %arg1[%c48, %c0_5] : memref<56x128xf32, #tpu.memory_space<vmem>>, vector<1x128xf32>
    %cst = arith.constant dense<0.000000e+00> : vector<8x32xf32>
    %5 = tpu.matmul %0, %1, %cst {dimension_numbers = #tpu.dot_dimension_numbers<[1], [0], [0], [1], [0, 0, 1, 1], [], []>} : vector<8x4xf32>, vector<4x32xf32>, vector<8x32xf32> -> vector<8x32xf32>
    %6 = vector.broadcast %2 : vector<1x32xf32> to vector<8x32xf32>
    %7 = arith.addf %5, %6 : vector<8x32xf32>
    %8 = arith.negf %7 : vector<8x32xf32>
    %9 = math.exp %8 : vector<8x32xf32>
    %cst_6 = arith.constant 1.000000e+00 : f32
    %10 = vector.broadcast %cst_6 : f32 to vector<8x32xf32>
    %11 = arith.addf %10, %9 : vector<8x32xf32>
    %12 = arith.divf %10, %11 : vector<8x32xf32>
    %cst_7 = arith.constant dense<0.000000e+00> : vector<8x128xf32>
    %13 = tpu.matmul %12, %3, %cst_7 {dimension_numbers = #tpu.dot_dimension_numbers<[1], [0], [0], [1], [0, 0, 1, 1], [], []>} : vector<8x32xf32>, vector<32x128xf32>, vector<8x128xf32> -> vector<8x128xf32>
    %14 = vector.broadcast %4 : vector<1x128xf32> to vector<8x128xf32>
    %15 = arith.addf %13, %14 : vector<8x128xf32>
    %c0_8 = arith.constant 0 : index
    %c0_9 = arith.constant 0 : index
    %16 = vector.load %arg2[%c0_8, %c0_9] : memref<8x128xf32, #tpu.memory_space<vmem>>, vector<8x128xf32>
    tpu.vector_store %arg2[%c0_8, %c0_9], %15 {strides = array<i32>} : memref<8x128xf32, #tpu.memory_space<vmem>>, vector<8x128xf32>,
    return
  }
}

</mosaic_0001>

<llo_original>
// kernel: tpu_custom_call.1
$region0: #{tpu_custom_call.1}
  #allocation0 [shape = 'u32[]', space=smem, size = 0x4, offset = 0x4, fixed_abs, tag = 'smem constant byte address 0x4 - core index']
  #allocation1 [shape = 'u32[72,128]{1,0:T(1,128)}', space=vmem, size = 0x9000, scoped, tag = 'internal scratch']
  %s0 = inlined_call_operand.vmem [shape: f32[8,4], index: 0, kind: input, shape index: {}]
  %s1 = inlined_call_operand.hbm [shape: f32[56,128], index: 1, kind: input, shape index: {}]
  %s2 = inlined_call_operand.hbm [shape: f32[8,128], index: 2, kind: output, shape index: {}]
  %s3 = sld [smem:[#allocation0]]
  $region22: #{tpu_custom_call.1} parent=0
    _
  %s5 = ssub.s32 1, %s3
  %s6 = scalar_select 0, %s5, %s3
  $region1: #{tpu_custom_call.1} parent=0
    #allocation2 [shape = 'u8[28672]{0}', space=vmem, size = 0x7000, scoped, tag = 'input window, operand 1, single buffered']
    #allocation3 [shape = 's32[1]{0}', space=sflag, size = 0x4, scoped, tag = 'scoped memory for tpu_custom_call.1']
    #allocation4 [shape = 's32[1]{0}', space=sflag, size = 0x4, scoped, tag = 'scoped memory for tpu_custom_call.1']
    #allocation5 [shape = 'u8[4096]{0}', space=vmem, size = 0x1000, scoped, tag = 'output window, operand 0, single buffered']
    %7 = vsyncpa [#allocation3], 0
    %8 = vsyncpa [#allocation4], 0
    // Predicated region
    $region2: #{tpu_custom_call.1} parent=1 // pred_check
      _
    $region3: #{tpu_custom_call.1} parent=1 // pred_check_branch
      %10 = sbr.rel (0) target = $region5
    $region4: #{tpu_custom_call.1} parent=1 // pred_region
      _
    $region5: #{tpu_custom_call.1} parent=1 // pred_fallthru
      _
    // Predicated region
    $region6: #{tpu_custom_call.1} parent=1 // pred_check
      _
    $region7: #{tpu_custom_call.1} parent=1 // pred_check_branch
      %12 = sbr.rel (0) target = $region9
    $region8: #{tpu_custom_call.1} parent=1 // pred_region
      %14 = vsyncadd [#allocation3], 0
      %s15 = sshll.u32 %s1, 4
      %s16 = int_to_ptr.hbm [resolvable:$true] %s15
      %s17 = sshll.u32 [#allocation2], 4
      %s18 = int_to_ptr.vmem [resolvable:$true] %s17
      %23 = dma.hbm_to_vmem [thread:$0]  %s16, 896, %s18, [#allocation3], 128, 128, 8
    $region9: #{tpu_custom_call.1} parent=1 // pred_fallthru
      _
    // Predicated region
    $region10: #{tpu_custom_call.1} parent=1 // pred_check
      _
    $region11: #{tpu_custom_call.1} parent=1 // pred_check_branch
      %25 = sbr.rel (0) target = $region13
    $region12: #{tpu_custom_call.1} parent=1 // pred_region
      %27 = dma.done [#allocation3], 896
    $region13: #{tpu_custom_call.1} parent=1 // pred_fallthru
      _
    %v28 = vld [vmem:[%s0] sm:$0xff]
    %v29 = vld [vmem:[#allocation2] sm:$0xf]
    %v30 = vld [vmem:[#allocation2 + $0x8] sm:$0x1]
    %v31 = vld [vmem:[#allocation2 + $0x10] sm:$0xff]
    %v32 = vld [vmem:[#allocation2 + $0x18] sm:$0xff]
    %v33 = vld [vmem:[#allocation2 + $0x20] sm:$0xff]
    %v34 = vld [vmem:[#allocation2 + $0x28] sm:$0xff]
    %v35 = vld [vmem:[#allocation2 + $0x30] sm:$0x1]
    %v36 = vperm.slane %v30, 0
    %vm37 = vcmask 31744
    %v39 = vsel %vm37, %v28, 0
    %vm41 = vcmask 1043456
    %v43 = vsel %vm41, %v29, 0
    %45 = vmatpush.msra.mxu0 0.0
    %46 = vmatpush.msra.mxu0 0.0
    %47 = vmatpush.msra.mxu0 0.0
    %48 = vmatpush.msra.mxu0 0.0
    %49 = vmatpush.msra.mxu0 0.0
    %50 = vmatpush.msra.mxu0 0.0
    %51 = vmatpush.msra.mxu0 0.0
    %52 = vmatpush.msra.mxu0 0.0
    %53 = vmatpush.msra.mxu0 0.0
    %54 = vmatpush.msra.mxu0 0.0
    %55 = vmatpush.msra.mxu0 0.0
    %56 = vmatpush.msra.mxu0 0.0
    %57 = vmatpush.msra.mxu0 0.0
    %58 = vmatpush.msra.mxu0 0.0
    %59 = vmatpush.msra.mxu0 0.0
    %60 = vmatpush.msra.mxu0 %v43
    %61 = vmatmul.f32.gmra.mxu0 %v39
    %v62 = vpop.f32.mrf.mxu0
    %v63 = vadd.f32 %v36, %v62
    %64 = vdwg.mxu0
    %v65 = vxor.u32 %v63, 2147483648
    %v66 = vmul.f32 %v65, 1.442695
    %v67 = vpow.pop %v66
    %v68 = vadd.f32 %v67, 1.0
    %v69 = vrcp.pop %v68
    %v70 = vmul.f32 %v68, %v69
    %v71 = vsub.f32 1.0, %v70
    %v72 = vmul.f32 %v69, %v71
    %v73 = vadd.f32 %v69, %v72
    %vm74 = vweird.f32 %v68
    %vm75 = vweird.f32 %v69
    %vm76 = vmor %vm74, %vm75
    %v77 = vsel %vm76, %v69, %v73
    %v78 = vand.u32 2147483647, %v68
    %vm79 = vcmp.eq.f32.partialorder %v78, 8.507059e+37
    %v80 = vand.u32 %v68, 2147483648
    %v81 = vor.u32 1.1754944e-38, %v80
    %v82 = vsel %vm79, %v81, %v77
    %v83 = vmul.f32 1.0, %v82
    %v84 = vperm.slane %v35, 0
    %vm85 = vcmask 261120
    %v87 = vsel %vm85, %v83, 0
    %89 = vmatpush.msra.mxu0 0.0
    %90 = vmatpush.msra.mxu0 0.0
    %91 = vmatpush.msra.mxu0 0.0
    %92 = vmatpush.msra.mxu0 0.0
    %93 = vmatpush.msra.mxu0 0.0
    %94 = vmatpush.msra.mxu0 0.0
    %95 = vmatpush.msra.mxu0 0.0
    %96 = vmatpush.msra.mxu0 0.0
    %97 = vmatpush.msra.mxu0 0.0
    %98 = vmatpush.msra.mxu0 0.0
    %99 = vmatpush.msra.mxu0 0.0
    %100 = vmatpush.msra.mxu0 0.0
    %101 = vmatpush.msra.mxu0 %v34
    %102 = vmatpush.msra.mxu0 %v33
    %103 = vmatpush.msra.mxu0 %v32
    %104 = vmatpush.msra.mxu0 %v31
    %105 = vmatmul.f32.gmra.mxu0 %v87
    %v106 = vpop.f32.mrf.mxu0
    %v107 = vadd.f32 %v84, %v106
    %108 = vdwg.mxu0
    %109 = vst [vmem:[#allocation5] sm:$0xff] %v107
    // Predicated region
    $region14: #{tpu_custom_call.1} parent=1 // pred_check
      _
    $region15: #{tpu_custom_call.1} parent=1 // pred_check_branch
      %111 = sbr.rel (0) target = $region17
    $region16: #{tpu_custom_call.1} parent=1 // pred_region
      %113 = vsyncadd [#allocation4], 0
      %s115 = sshll.u32 [#allocation5], 4
      %s116 = int_to_ptr.vmem [resolvable:$true] %s115
      %s117 = sshll.u32 %s2, 4
      %s118 = int_to_ptr.hbm [resolvable:$true] %s117
      %120 = dma.vmem_to_hbm [thread:$0]  %s116, 128, %s118, [#allocation4]
    $region17: #{tpu_custom_call.1} parent=1 // pred_fallthru
      _
    // Predicated region
    $region18: #{tpu_custom_call.1} parent=1 // pred_check
      _
    $region19: #{tpu_custom_call.1} parent=1 // pred_check_branch
      %122 = sbr.rel (0) target = $region21
    $region20: #{tpu_custom_call.1} parent=1 // pred_region
      %124 = dma.done [#allocation4], 128
    $region21: #{tpu_custom_call.1} parent=1 // pred_fallthru
      _
    %125 = vsyncpa [#allocation3], 1
    %126 = vsyncpa [#allocation4], 1

</llo_original>
